<compile_context>
chip_gen: v5e
topology: v5e:2x2
jax: 0.10.0
libtpu: 0.0.40
codegen_flags: <defaults>
</compile_context>

<pallas_src>
import math

import jax
import jax.numpy as jnp
from jax.experimental import pallas as pl
from jax.experimental.pallas import tpu as pltpu

_LANE = 128
_TARGET_BLOCK_BYTES = 2 * 1024 * 1024  # mem-bound roofline plateaus ~1-2 MiB blocks


def _build_pe_table(d_model: int, max_len: int = 5000,
                    dtype=jnp.float32) -> jnp.ndarray:
    """Sinusoidal PE table, shape (max_len, d_model), pre-cast to model dtype."""
    position = jnp.arange(0, max_len, dtype=jnp.float32)[:, None]          # (L, 1)
    div_term = jnp.exp(
        jnp.arange(0, d_model, 2, dtype=jnp.float32)
        * -(math.log(10000.0) / d_model)
    )                                                                       # (ceil(D/2),)
    pe = jnp.zeros((max_len, d_model), dtype=jnp.float32)
    pe = pe.at[:, 0::2].set(jnp.sin(position * div_term))
    # Trim cos columns so odd d_model works too (classic recipe breaks there).
    pe = pe.at[:, 1::2].set(jnp.cos(position * div_term)[:, : d_model // 2])
    return pe.astype(dtype)


def _pe_add_kernel(x_ref, pe_ref, o_ref):
    # x_ref / pe_ref / o_ref: (tile_r, 128) same-dtype dense tiles.
    o_ref[...] = x_ref[...] + pe_ref[...]


def _sublane_quantum(itemsize: int) -> int:
    return {4: 8, 2: 16, 1: 32}.get(itemsize, 8)


def _choose_row_tile(rows_per_batch: int, batch: int, sub_q: int, itemsize: int,
                     target_block_bytes: int = _TARGET_BLOCK_BYTES) -> int:
    """Largest multiple-of-sub_q divisor of rows_per_batch whose (tile, 128)
    block fits target_block_bytes; stepped down (when possible) so the grid has
    at least 2 steps (prefetch/writeback overlap + v7x dual-TC sharding).

    Real pipelined VMEM footprint = 6 * block_bytes (x/pe/out, double-buffered),
    so a 2 MiB cap keeps ~12 MiB live on every generation.
    """
    max_rows = max(sub_q, target_block_bytes // (_LANE * itemsize))
    hi = min(rows_per_batch, max_rows)
    divs = [d for d in range(sub_q, hi + 1, sub_q) if rows_per_batch % d == 0]
    if not divs:                       # rows_per_batch is always a multiple of sub_q
        divs = [sub_q]
    tile = divs[-1]
    i = len(divs) - 1
    while batch * (rows_per_batch // tile) < 2 and i > 0:
        i -= 1
        tile = divs[i]
    return tile


@jax.jit
def positional_encoding(x: jnp.ndarray, pe_table: jnp.ndarray) -> jnp.ndarray:
    """x: (B, S, D); pe_table: (max_len, D). Returns x + pe[:S] (eval-mode dropout)."""
    B, S, D = x.shape
    if S > pe_table.shape[0]:
        raise ValueError(f"sequence length {S} exceeds max_len {pe_table.shape[0]}")
    if D != pe_table.shape[1]:
        raise ValueError(f"d_model mismatch: x has {D}, pe table has {pe_table.shape[1]}")

    # PE slice; cast is a no-op when the table is pre-built in the model dtype.
    pe = pe_table[:S]
    if pe.dtype != x.dtype:
        pe = pe.astype(x.dtype)

    itemsize = jnp.dtype(x.dtype).itemsize
    sub_q = _sublane_quantum(itemsize)

    # Lane-dense fold of (S, D) -> N, padded so R = N_pad/128 is a multiple of
    # the sublane quantum (guarantees sublane-dense tiles for any S, D).
    N = S * D
    row_align = _LANE * sub_q
    N_pad = -(-N // row_align) * row_align

    x2 = x.reshape(B, N)
    pe2 = pe.reshape(1, N)
    if N_pad != N:
        x2 = jnp.pad(x2, ((0, 0), (0, N_pad - N)))
        pe2 = jnp.pad(pe2, ((0, 0), (0, N_pad - N)))

    R = N_pad // _LANE                    # 128-lane rows per batch (multiple of sub_q)
    x3 = x2.reshape(B * R, _LANE)
    pe3 = pe2.reshape(R, _LANE)

    tile_r = _choose_row_tile(R, B, sub_q, itemsize)
    bpb = R // tile_r                     # row-blocks per batch
    grid = (bpb, B)                       # batch innermost -> PE block reused step-to-step

    out3 = pl.pallas_call(
        _pe_add_kernel,
        out_shape=jax.ShapeDtypeStruct((B * R, _LANE), x.dtype),
        grid_spec=pltpu.PrefetchScalarGridSpec(
            num_scalar_prefetch=0,
            grid=grid,
            in_specs=[
                pl.BlockSpec((tile_r, _LANE), lambda q, b, bpb=bpb: (b * bpb + q, 0)),  # x
                pl.BlockSpec((tile_r, _LANE), lambda q, b: (q, 0)),                     # pe
            ],
            out_specs=pl.BlockSpec((tile_r, _LANE),
                                   lambda q, b, bpb=bpb: (b * bpb + q, 0)),
        ),
        compiler_params=pltpu.CompilerParams(
            dimension_semantics=("parallel", "parallel"),
            vmem_limit_bytes=32 * 1024 * 1024,   # ~12 MiB actually live; safe on v5e/v6e/v7x
        ),
        cost_estimate=pl.CostEstimate(
            flops=B * N_pad,
            transcendentals=0,
            bytes_accessed=(2 * B * N_pad + N_pad) * itemsize,  # pe read once (reused)
        ),
        input_output_aliases={0: 0},     # write result in place over the folded x buffer
    )(x3, pe3)

    return out3.reshape(B, N_pad)[:, :N].reshape(B, S, D)


def positional_encoding_ref(x: jnp.ndarray, pe_table: jnp.ndarray) -> jnp.ndarray:
    """Pure-JAX reference of the PyTorch forward (eval mode)."""
    S = x.shape[1]
    return x + pe_table[:S].astype(x.dtype)[None, :, :]


if __name__ == "__main__":
    d_model = 32
    batch = 2
    seq = 8
    dropout_p = 0.1  # stored but inactive (eval mode)

    key = jax.random.PRNGKey(0)
    x = jax.random.normal(key, (batch, seq, d_model), dtype=jnp.float32)

    # Table pre-built in the model dtype (hoists the per-call cast out of the wrapper).
    pe_table = _build_pe_table(d_model, max_len=5000, dtype=x.dtype)

    out = positional_encoding(x, pe_table)
    out = jax.block_until_ready(out)

    ref = positional_encoding_ref(x, pe_table)
    assert out.shape == (batch, seq, d_model)
    assert jnp.allclose(out, ref, atol=1e-6, rtol=1e-6), "mismatch vs reference"

    print("KERNEL_OK")
</pallas_src>

<mosaic_0001>
module attributes {stable_mosaic.version = 11 : i64} {
  func.func @_pe_add_kernel(%arg0: i32, %arg1: i32, %arg2: memref<8x128xf32, #tpu.memory_space<vmem>>, %arg3: memref<8x128xf32, #tpu.memory_space<vmem>>, %arg4: memref<8x128xf32, #tpu.memory_space<vmem>>) attributes {dimension_semantics = [#tpu.dimension_semantics<parallel>, #tpu.dimension_semantics<parallel>], iteration_bounds = array<i64: 1, 2>, scalar_prefetch = 0 : i64, scratch_operands = 0 : i64, tpu.core_type = #tpu.core_type<tc>, window_params = [{transform_indices = @transform_0, window_bounds = array<i64: 8, 128>}, {transform_indices = @transform_1, window_bounds = array<i64: 8, 128>}, {transform_indices = @transform_2, window_bounds = array<i64: 8, 128>}]} {
    %c0 = arith.constant 0 : index
    %c0_0 = arith.constant 0 : index
    %0 = vector.load %arg2[%c0, %c0_0] : memref<8x128xf32, #tpu.memory_space<vmem>>, vector<8x128xf32>
    %c0_1 = arith.constant 0 : index
    %c0_2 = arith.constant 0 : index
    %1 = vector.load %arg3[%c0_1, %c0_2] : memref<8x128xf32, #tpu.memory_space<vmem>>, vector<8x128xf32>
    %2 = arith.addf %0, %1 : vector<8x128xf32>
    %c0_3 = arith.constant 0 : index
    %c0_4 = arith.constant 0 : index
    %3 = vector.load %arg4[%c0_3, %c0_4] : memref<8x128xf32, #tpu.memory_space<vmem>>, vector<8x128xf32>
    tpu.vector_store %arg4[%c0_3, %c0_4], %2 {strides = array<i32>} : memref<8x128xf32, #tpu.memory_space<vmem>>, vector<8x128xf32>,
    return
  }
  func.func @transform_0(%arg0: i32, %arg1: i32) -> (i32, i32) {
    %c1_i32 = arith.constant 1 : i32
    %0 = arith.muli %arg1, %c1_i32 : i32
    %1 = arith.addi %0, %arg0 : i32
    %c0_i32 = arith.constant 0 : i32
    %c0_i32_0 = arith.constant 0 : i32
    return %1, %c0_i32 : i32, i32
  }
  func.func @transform_1(%arg0: i32, %arg1: i32) -> (i32, i32) {
    %c0_i32 = arith.constant 0 : i32
    %c0_i32_0 = arith.constant 0 : i32
    return %arg0, %c0_i32 : i32, i32
  }
  func.func @transform_2(%arg0: i32, %arg1: i32) -> (i32, i32) {
    %c1_i32 = arith.constant 1 : i32
    %0 = arith.muli %arg1, %c1_i32 : i32
    %1 = arith.addi %0, %arg0 : i32
    %c0_i32 = arith.constant 0 : i32
    %c0_i32_0 = arith.constant 0 : i32
    return %1, %c0_i32 : i32, i32
  }
}

</mosaic_0001>

<llo_original>
// kernel: positional_encoding.1
$region0: #{positional_encoding.1}
  #allocation0 [shape = 'u32[]', space=smem, size = 0x4, offset = 0x4, fixed_abs, tag = 'smem constant byte address 0x4 - core index']
  #allocation1 [shape = 'u32[72,128]{1,0:T(1,128)}', space=vmem, size = 0x9000, scoped, tag = 'internal scratch']
  %s0 = inlined_call_operand.vmem [shape: f32[16,128], index: 0, kind: input, shape index: {}, may-alias: {0,2}]
  %s1 = inlined_call_operand.vmem [shape: f32[8,128], index: 1, kind: input, shape index: {}]
  %s2 = inlined_call_operand.vmem [shape: f32[16,128], index: 2, kind: output, shape index: {}, may-alias: {0,2}]
  %s3 = sld [smem:[#allocation0]]
  $region41: #{positional_encoding.1} parent=0
    _
  %s5 = ssub.s32 1, %s3
  %s6 = scalar_select 0, %s5, %s3
  loop: start=0, step=1, limit=4
  $region2: #{positional_encoding.1} parent=0 // loop_pre_header
    _
  $region3: #{positional_encoding.1} parent=0 // loop_header
    %s8 = sphi 0, %s12
    %p9 = scmp.ge.s32.totalorder %s8, 4
    %s15 = sphi 0, %s27
    %s16 = sphi 0, %s23
    %s17 = sphi 0, %s15
    %s18 = sphi 0, %s16
    %s19 = sphi 0, %s17
    %s20 = sphi 0, %s18
    %s32 = sphi 0, %s34
    %s35 = sphi 0, %s32
    %s36 = sphi 0, %s35
    %s52 = sphi 0, %s36
    %s58 = sphi 0, %s60
    %s61 = sphi 0, %s58
    %s62 = sphi 0, %s61
    %s78 = sphi 0, %s62
    %s86 = sphi 0, %s88
    %s89 = sphi 0, %s86
    %s90 = sphi 0, %s89
    %s106 = sphi 0, %s90
  $region4: #{positional_encoding.1} parent=0 // loop_header_branch
    %11 = sbr.rel (%p9) target = $region8
  $region5: #{positional_encoding.1} parent=0 // loop_body
    %s13 = ssub.s32 %s8, 1
    %s14 = ssub.s32 %s8, 2
    %s21 = sadd.s32 1, %s16
    %p22 = scmp.ge.s32.totalorder %s21, 2
    %s23 = scalar_select %p22, 0, %s21
    %s24 = sadd.s32 1, %s15
    %s25 = scalar_select %p22, %s24, %s15
    %p26 = scmp.ge.s32.totalorder %s25, 1
    %s27 = scalar_select %p26, 0, %s25
    %s28 = sadd.s32 %s16, %s15
    %s29 = sadd.s32 %s23, %s27
    %s30 = ssub.s32 %s28, %s29
    %p31 = scmp.eq.s32.totalorder %s30, 0
    %s33 = sadd.s32 %s32, 1
    %s34 = scalar_select %p31, %s32, %s33
    %p37 = pneg %p31
    %p38 = scmp.eq.s32.totalorder %s8, 1
    %p39 = por %p37, %p38
    %p40 = scmp.ne.s32.totalorder %s32, %s35
    %p41 = scmp.eq.s32.totalorder %s8, 0
    %p42 = por %p40, %p41
    %p43 = scmp.ne.s32.totalorder %s32, %s35
    %p44 = scmp.eq.s32.totalorder %s13, 1
    %p45 = por %p43, %p44
    %p46 = scmp.ne.s32.totalorder %s35, %s36
    %p47 = scmp.eq.s32.totalorder %s13, 0
    %p48 = por %p46, %p47
    %p49 = scmp.ne.s32.totalorder %s35, %s36
    %p50 = scmp.eq.s32.totalorder %s14, 1
    %p51 = por %p49, %p50
    %p53 = scmp.ne.s32.totalorder %s36, %s52
    %p54 = scmp.eq.s32.totalorder %s14, 0
    %p55 = por %p53, %p54
    %s56 = ssub.s32 %s15, %s27
    %p57 = scmp.eq.s32.totalorder %s56, 0
    %s59 = sadd.s32 %s58, 1
    %s60 = scalar_select %p57, %s58, %s59
    %p63 = pneg %p57
    %p64 = scmp.eq.s32.totalorder %s8, 1
    %p65 = por %p63, %p64
    %p66 = scmp.ne.s32.totalorder %s58, %s61
    %p67 = scmp.eq.s32.totalorder %s8, 0
    %p68 = por %p66, %p67
    %p69 = scmp.ne.s32.totalorder %s58, %s61
    %p70 = scmp.eq.s32.totalorder %s13, 1
    %p71 = por %p69, %p70
    %p72 = scmp.ne.s32.totalorder %s61, %s62
    %p73 = scmp.eq.s32.totalorder %s13, 0
    %p74 = por %p72, %p73
    %p75 = scmp.ne.s32.totalorder %s61, %s62
    %p76 = scmp.eq.s32.totalorder %s14, 1
    %p77 = por %p75, %p76
    %p79 = scmp.ne.s32.totalorder %s62, %s78
    %p80 = scmp.eq.s32.totalorder %s14, 0
    %p81 = por %p79, %p80
    %s82 = sadd.s32 %s16, %s15
    %s83 = sadd.s32 %s23, %s27
    %s84 = ssub.s32 %s82, %s83
    %p85 = scmp.eq.s32.totalorder %s84, 0
    %s87 = sadd.s32 %s86, 1
    %s88 = scalar_select %p85, %s86, %s87
    %p91 = pneg %p85
    %p92 = scmp.eq.s32.totalorder %s8, 1
    %p93 = por %p91, %p92
    %p94 = scmp.ne.s32.totalorder %s86, %s89
    %p95 = scmp.eq.s32.totalorder %s8, 0
    %p96 = por %p94, %p95
    %p97 = scmp.ne.s32.totalorder %s86, %s89
    %p98 = scmp.eq.s32.totalorder %s13, 1
    %p99 = por %p97, %p98
    %p100 = scmp.ne.s32.totalorder %s89, %s90
    %p101 = scmp.eq.s32.totalorder %s13, 0
    %p102 = por %p100, %p101
    %p103 = scmp.ne.s32.totalorder %s89, %s90
    %p104 = scmp.eq.s32.totalorder %s14, 1
    %p105 = por %p103, %p104
    %p107 = scmp.ne.s32.totalorder %s90, %s106
    %p108 = scmp.eq.s32.totalorder %s14, 0
    %p109 = por %p107, %p108
    %p110 = scmp.le.s32.totalorder 1, %s8
    %p111 = scmp.lt.s32.totalorder %s8, 3
    %p112 = pnand %p110, %p111
    %p113 = pneg %p112
    // Predicated region
    $region9: #{positional_encoding.1} parent=5 // pred_check
      _
    $region10: #{positional_encoding.1} parent=5 // pred_check_branch
      %115 = sbr.rel (%p112) target = $region12
    $region11: #{positional_encoding.1} parent=5 // pred_region
      %s116 = ssub.s32 %s8, 1
      // Predicated region
      $region13: #{positional_encoding.1} parent=11 // pred_check
        %p117 = pneg %p74
      $region14: #{positional_encoding.1} parent=11 // pred_check_branch
        %119 = sbr.rel (%p117) target = $region16
      $region15: #{positional_encoding.1} parent=11 // pred_region
        %p120 = scmp.lt.s32.totalorder %s17, 0
        %s121 = scalar_select %p120, %s17, 0
        %s122 = smul.addr %s121, 8
        %s123 = scalar_lea.vmem %s1, %s122
      $region16: #{positional_encoding.1} parent=11 // pred_fallthru
        _
    $region12: #{positional_encoding.1} parent=5 // pred_fallthru
      _
    %p124 = scmp.lt.s32.totalorder %s8, 2
    // Predicated region
    $region17: #{positional_encoding.1} parent=5 // pred_check
      %p125 = pneg %p124
    $region18: #{positional_encoding.1} parent=5 // pred_check_branch
      %127 = sbr.rel (%p125) target = $region20
    $region19: #{positional_encoding.1} parent=5 // pred_region
      // Predicated region
      $region21: #{positional_encoding.1} parent=19 // pred_check
        %p128 = pneg %p42
      $region22: #{positional_encoding.1} parent=19 // pred_check_branch
        %130 = sbr.rel (%p128) target = $region24
      $region23: #{positional_encoding.1} parent=19 // pred_region
        %s131 = sadd.s32 %s16, %s15
        %p132 = scmp.lt.s32.totalorder %s131, 1
        %s133 = scalar_select %p132, %s131, 1
        %s134 = smul.addr %s133, 8
        %s135 = scalar_lea.vmem %s0, %s134
        %s136 = sadd.s32 %s16, %s15
      $region24: #{positional_encoding.1} parent=19 // pred_fallthru
        _
    $region20: #{positional_encoding.1} parent=5 // pred_fallthru
      _
    %p137 = scmp.le.s32.totalorder 1, %s8
    %p138 = scmp.lt.s32.totalorder %s8, 3
    %p139 = pnand %p137, %p138
    %p140 = pneg %p139
    // Predicated region
    $region25: #{positional_encoding.1} parent=5 // pred_check
      _
    $region26: #{positional_encoding.1} parent=5 // pred_check_branch
      %142 = sbr.rel (%p139) target = $region28
    $region27: #{positional_encoding.1} parent=5 // pred_region
      %s143 = ssub.s32 %s8, 1
      %s144 = sadd.s32 %s18, %s17
      %p145 = scmp.lt.s32.totalorder %s144, 1
      %s146 = scalar_select %p145, %s144, 1
      %s147 = smul.addr %s146, 8
      %s148 = scalar_lea.vmem %s0, %s147
      %p149 = pneg %p48
      %p150 = pneg %p45
      %p151 = scmp.lt.s32.totalorder %s17, 0
      %s152 = scalar_select %p151, %s17, 0
      %s153 = smul.addr %s152, 8
      %s154 = scalar_lea.vmem %s1, %s153
      %p155 = pneg %p74
      %p156 = pneg %p71
      %p157 = pneg %p102
      %p158 = pneg %p99
      %s159 = sadd.s32 %s18, %s17
      %p160 = scmp.lt.s32.totalorder %s159, 1
      %s161 = scalar_select %p160, %s159, 1
      %s162 = smul.addr %s161, 8
      %s163 = scalar_lea.vmem %s2, %s162
      %s164 = sadd.s32 %s18, %s17
      %p165 = scmp.lt.s32.totalorder %s164, 1
      %s166 = scalar_select %p165, %s164, 1
      %s167 = smul.addr %s166, 8
      %s168 = scalar_lea.vmem %s0, %s167
      %s169 = sadd.s32 %s18, %s17
      %p170 = scmp.lt.s32.totalorder %s17, 0
      %s171 = scalar_select %p170, %s17, 0
      %s172 = smul.addr %s171, 8
      %s173 = scalar_lea.vmem %s1, %s172
      %s174 = sadd.s32 %s18, %s17
      %p175 = scmp.lt.s32.totalorder %s174, 1
      %s176 = scalar_select %p175, %s174, 1
      %s177 = smul.addr %s176, 8
      %s178 = scalar_lea.vmem %s2, %s177
      %s179 = sadd.s32 %s18, %s17
      %v180 = vld [vmem:[%s168] sm:$0xff]
      %v181 = vld [vmem:[%s173] sm:$0xff]
      %v182 = vadd.f32 %v180, %v181
      %183 = vst [vmem:[%s178] sm:$0xff] %v182
      %s184 = sadd.s32 %s18, %s17
      %p185 = scmp.lt.s32.totalorder %s184, 1
      %s186 = scalar_select %p185, %s184, 1
      %s187 = smul.addr %s186, 8
      %s188 = scalar_lea.vmem %s2, %s187
      // Predicated region
      $region29: #{positional_encoding.1} parent=27 // pred_check
        %p189 = pneg %p99
      $region30: #{positional_encoding.1} parent=27 // pred_check_branch
        %191 = sbr.rel (%p189) target = $region32
      $region31: #{positional_encoding.1} parent=27 // pred_region
        %s192 = sadd.s32 %s18, %s17
      $region32: #{positional_encoding.1} parent=27 // pred_fallthru
        _
    $region28: #{positional_encoding.1} parent=5 // pred_fallthru
      _
    %p193 = scmp.le.s32.totalorder 2, %s8
    // Predicated region
    $region33: #{positional_encoding.1} parent=5 // pred_check
      %p194 = pneg %p193
    $region34: #{positional_encoding.1} parent=5 // pred_check_branch
      %196 = sbr.rel (%p194) target = $region36
    $region35: #{positional_encoding.1} parent=5 // pred_region
      %s197 = ssub.s32 %s8, 2
      // Predicated region
      $region37: #{positional_encoding.1} parent=35 // pred_check
        %p198 = pneg %p105
      $region38: #{positional_encoding.1} parent=35 // pred_check_branch
        %200 = sbr.rel (%p198) target = $region40
      $region39: #{positional_encoding.1} parent=35 // pred_region
        %s201 = sadd.s32 %s20, %s19
        %p202 = scmp.lt.s32.totalorder %s201, 1
        %s203 = scalar_select %p202, %s201, 1
        %s204 = smul.addr %s203, 8
        %s205 = scalar_lea.vmem %s2, %s204
      $region40: #{positional_encoding.1} parent=35 // pred_fallthru
        _
    $region36: #{positional_encoding.1} parent=5 // pred_fallthru
      _
  $region6: #{positional_encoding.1} parent=0 // loop_footer
    %s12 = sadd.s32 1, %s8
  $region7: #{positional_encoding.1} parent=0 // loop_footer_branch
    %7 = sbr.rel target = $region3
  $region8: #{positional_encoding.1} parent=0 // loop_exit
    _

</llo_original>
